<compile_context>
chip_gen: v6e
topology: v6e:2x2x1
jax: 0.10.0
libtpu: 0.0.40
codegen_flags: <defaults>
</compile_context>

<pallas_src>
import functools

import jax
import jax.numpy as jnp
import numpy as np
from jax import lax
from jax.experimental import pallas as pl
from jax.experimental.pallas import tpu as pltpu


def _round_up(a, m):
    return pl.cdiv(a, m) * m


# ----------------------------------------------------------------------------
# Kernel 1a: hoisted input projection (plain mode).  Parallel over row blocks.
#   o = x @ w + b          (f0 already folded into w by the wrapper)
# ----------------------------------------------------------------------------
def _proj_kernel(x_ref, w_ref, b_ref, o_ref):
    o_ref[...] = (
        jnp.dot(x_ref[...], w_ref[...], preferred_element_type=jnp.float32)
        + b_ref[...]
    ).astype(o_ref.dtype)


# ----------------------------------------------------------------------------
# Kernel 1b: hoisted projections (extend mode).  Parallel over row blocks.
#   p  = tanh(x * f0) @ w  + b      (f0 cannot be folded through the tanh)
#   h2 = tanh(x @ w2 + b2)          (f2 already folded into w2) -- whole NN2
# ----------------------------------------------------------------------------
def _proj_extend_kernel(x_ref, w_ref, b_ref, w2_ref, b2_ref, p_ref, h2_ref, *, f0):
    x = x_ref[...]
    p_ref[...] = (
        jnp.dot(jnp.tanh(x * f0), w_ref[...], preferred_element_type=jnp.float32)
        + b_ref[...]
    ).astype(p_ref.dtype)
    h2_ref[...] = jnp.tanh(
        jnp.dot(x, w2_ref[...], preferred_element_type=jnp.float32) + b2_ref[...]
    ).astype(h2_ref.dtype)


# ----------------------------------------------------------------------------
# Kernel 2: sequential recurrence.  Grid axis 0 = time blocks (arbitrary).
# Hidden state lives in VMEM scratch and persists across grid steps.
#   h_t = tanh(P_t + h_{t-1} @ wh)      (f1 already folded into wh)
# ----------------------------------------------------------------------------
def _recurrence_kernel(p_ref, wh_ref, o_ref, h_sc, *, tt):
    @pl.when(pl.program_id(0) == 0)
    def _init():
        h_sc[...] = jnp.zeros_like(h_sc)

    def step(i, h):
        h = jnp.tanh(
            p_ref[i]
            + jnp.dot(h, wh_ref[...], preferred_element_type=jnp.float32)
        )
        o_ref[i] = h
        return h

    h_sc[...] = lax.fori_loop(0, tt, step, h_sc[...], unroll=True)


# ----------------------------------------------------------------------------
# pallas_call wrappers
# ----------------------------------------------------------------------------
def _projection(x_flat, w, b, rb):
    r_pad, s = x_flat.shape
    h = w.shape[1]
    return pl.pallas_call(
        _proj_kernel,
        out_shape=jax.ShapeDtypeStruct((r_pad, h), jnp.float32),
        grid_spec=pltpu.PrefetchScalarGridSpec(
            num_scalar_prefetch=0,
            grid=(r_pad // rb,),
            in_specs=[
                pl.BlockSpec((rb, s), lambda r: (r, 0)),
                pl.BlockSpec((s, h), lambda r: (0, 0)),
                pl.BlockSpec((1, h), lambda r: (0, 0)),
            ],
            out_specs=pl.BlockSpec((rb, h), lambda r: (r, 0)),
        ),
        compiler_params=pltpu.CompilerParams(
            dimension_semantics=("parallel",),
        ),
    )(x_flat, w, b)


def _projection_extend(x_flat, w, b, w2, b2, rb, f0):
    r_pad, s = x_flat.shape
    h = w.shape[1]
    return pl.pallas_call(
        functools.partial(_proj_extend_kernel, f0=f0),
        out_shape=(
            jax.ShapeDtypeStruct((r_pad, h), jnp.float32),
            jax.ShapeDtypeStruct((r_pad, h), jnp.float32),
        ),
        grid_spec=pltpu.PrefetchScalarGridSpec(
            num_scalar_prefetch=0,
            grid=(r_pad // rb,),
            in_specs=[
                pl.BlockSpec((rb, s), lambda r: (r, 0)),
                pl.BlockSpec((s, h), lambda r: (0, 0)),
                pl.BlockSpec((1, h), lambda r: (0, 0)),
                pl.BlockSpec((s, h), lambda r: (0, 0)),
                pl.BlockSpec((1, h), lambda r: (0, 0)),
            ],
            out_specs=[
                pl.BlockSpec((rb, h), lambda r: (r, 0)),
                pl.BlockSpec((rb, h), lambda r: (r, 0)),
            ],
        ),
        compiler_params=pltpu.CompilerParams(
            dimension_semantics=("parallel",),
        ),
    )(x_flat, w, b, w2, b2)


def _recurrence(p, wh, tt):
    t_pad, bsz, h = p.shape
    return pl.pallas_call(
        functools.partial(_recurrence_kernel, tt=tt),
        out_shape=jax.ShapeDtypeStruct((t_pad, bsz, h), jnp.float32),
        grid_spec=pltpu.PrefetchScalarGridSpec(
            num_scalar_prefetch=0,
            grid=(t_pad // tt,),
            in_specs=[
                pl.BlockSpec((tt, bsz, h), lambda t: (t, 0, 0)),
                pl.BlockSpec((h, h), lambda t: (0, 0)),
            ],
            out_specs=pl.BlockSpec((tt, bsz, h), lambda t: (t, 0, 0)),
            scratch_shapes=[pltpu.VMEM((bsz, h), jnp.float32)],
        ),
        compiler_params=pltpu.CompilerParams(
            dimension_semantics=("arbitrary",),  # true time recurrence
        ),
    )(p, wh)


# ----------------------------------------------------------------------------
# Forward wrapper
# ----------------------------------------------------------------------------
def random_rnn_forward(x, params, factors=(1.0, 1.0, 1.0), extend=False,
                       time_block=32, row_block=512):
    """Pallas forward of randomRNN.

    Args:
      x: (T, B, S) float32 input.
      params: dict with 'W' (H, S+H), 'b' (H,), and if extend also
              'W2' (H, S), 'b2' (H,)  -- same layout as torch.nn.Linear.
      factors: 3-tuple of python floats (trace-time constants).
      extend: bool.
    Returns: (T, B, H) or (T, B, 2H) float32.
    """
    T, B, S = x.shape
    W = jnp.asarray(params["W"], jnp.float32)
    H = W.shape[0]
    ws_t = W[:, :S].T                                     # (S, H)  input -> hidden
    wh_t = W[:, S:].T                                     # (H, H)  hidden -> hidden
    b = jnp.asarray(params["b"], jnp.float32)[None, :]    # (1, H)

    f0, f1, f2 = (float(f) for f in factors)
    x = x.astype(jnp.float32)

    # ---- time blocking for the sequential recurrence ------------------------
    TT = min(T, time_block)
    T_pad = _round_up(T, TT)
    if T_pad != T:
        x = jnp.pad(x, ((0, T_pad - T), (0, 0), (0, 0)))

    # ---- hoisted projections: one parallel matmul over flattened (T*B, S) ---
    R = T_pad * B
    RB = min(row_block, _round_up(R, 8))
    R_pad = _round_up(R, RB)
    x_flat = x.reshape(R, S)
    if R_pad != R:
        x_flat = jnp.pad(x_flat, ((0, R_pad - R), (0, 0)))

    if not extend:
        # (x*f0) @ ws + b  ==  x @ (ws*f0) + b    -> fold f0 into the weight.
        p_flat = _projection(x_flat, ws_t * f0, b, RB)
        h2 = None
    else:
        w2_t = jnp.asarray(params["W2"], jnp.float32).T * f2   # fold f2 into W2
        b2 = jnp.asarray(params["b2"], jnp.float32)[None, :]
        p_flat, h2_flat = _projection_extend(x_flat, ws_t, b, w2_t, b2, RB, f0)
        h2 = h2_flat[:R].reshape(T_pad, B, H)[:T]

    p = p_flat[:R].reshape(T_pad, B, H)

    # ---- sequential recurrence (fold f1 into Wh) -----------------------------
    hs = _recurrence(p, wh_t * f1, TT)[:T]                      # (T, B, H)

    if extend:
        # Single concat outside the serial chain (was per-step in-kernel).
        return jnp.concatenate([hs, h2], axis=-1)
    return hs


# ----------------------------------------------------------------------------
# Pure-JAX reference (mirrors the PyTorch forward exactly)
# ----------------------------------------------------------------------------
def reference_forward(x, params, factors=(1.0, 1.0, 1.0), extend=False):
    T, B, S = x.shape
    W, b = params["W"], params["b"]
    H = W.shape[0]
    h = jnp.zeros((B, H), jnp.float32)
    outs = []
    for i in range(T):
        if extend:
            xi = jnp.concatenate([jnp.tanh(x[i] * factors[0]), h * factors[1]], -1)
        else:
            xi = jnp.concatenate([x[i] * factors[0], h * factors[1]], -1)
        h = jnp.tanh(xi @ W.T + b)
        if extend:
            h2 = jnp.tanh((x[i] * factors[2]) @ params["W2"].T + params["b2"])
            outs.append(jnp.concatenate([h, h2], -1))
        else:
            outs.append(h)
    return jnp.stack(outs)


# ----------------------------------------------------------------------------
# Parameter init: torch.nn.init.normal_(w, 0, 1) on weight and bias.
# ----------------------------------------------------------------------------
def make_params(key, hidden_size, state_size, extend=False):
    H = hidden_size // 2 if extend else hidden_size
    k1, k2, k3, k4 = jax.random.split(key, 4)
    params = {
        "W": jax.random.normal(k1, (H, state_size + H), jnp.float32),
        "b": jax.random.normal(k2, (H,), jnp.float32),
    }
    if extend:
        params["W2"] = jax.random.normal(k3, (H, state_size), jnp.float32)
        params["b2"] = jax.random.normal(k4, (H,), jnp.float32)
    return params


if __name__ == "__main__":
    key = jax.random.PRNGKey(0)
    k_in, k_p1, k_p2 = jax.random.split(key, 3)

    T, B, S, HIDDEN = 8, 2, 4, 32
    factors = (0.7, 0.3, 0.5)

    x = jax.random.normal(k_in, (T, B, S), jnp.float32)

    fwd = jax.jit(random_rnn_forward, static_argnames=("factors", "extend"))

    # ---- extend=False ----
    params = make_params(k_p1, HIDDEN, S, extend=False)
    out = fwd(x, params, factors=factors, extend=False)
    out = jax.block_until_ready(out)
    ref = reference_forward(x, params, factors, extend=False)
    assert out.shape == (T, B, HIDDEN)
    np.testing.assert_allclose(np.asarray(out), np.asarray(ref), atol=1e-5, rtol=1e-5)

    # ---- extend=True ----
    params_e = make_params(k_p2, HIDDEN, S, extend=True)
    out_e = fwd(x, params_e, factors=factors, extend=True)
    out_e = jax.block_until_ready(out_e)
    ref_e = reference_forward(x, params_e, factors, extend=True)
    assert out_e.shape == (T, B, HIDDEN)  # 2 * (HIDDEN // 2)
    np.testing.assert_allclose(np.asarray(out_e), np.asarray(ref_e), atol=1e-5, rtol=1e-5)

    print("KERNEL_OK")
</pallas_src>

<mosaic_0001>
module attributes {stable_mosaic.version = 11 : i64} {
  func.func @_proj_kernel(%arg0: i32, %arg1: memref<16x4xf32, #tpu.memory_space<vmem>>, %arg2: memref<4x32xf32, #tpu.memory_space<vmem>>, %arg3: memref<1x32xf32, #tpu.memory_space<vmem>>, %arg4: memref<16x32xf32, #tpu.memory_space<vmem>>) attributes {dimension_semantics = [#tpu.dimension_semantics<parallel>], iteration_bounds = array<i64: 1>, scalar_prefetch = 0 : i64, scratch_operands = 0 : i64, tpu.core_type = #tpu.core_type<tc>, window_params = [{transform_indices = @transform_0, window_bounds = array<i64: 16, 4>}, {pipeline_mode = #tpu.pipeline_mode<synchronous>, transform_indices = @transform_1, window_bounds = array<i64: 4, 32>}, {pipeline_mode = #tpu.pipeline_mode<synchronous>, transform_indices = @transform_2, window_bounds = array<i64: 1, 32>}, {transform_indices = @transform_3, window_bounds = array<i64: 16, 32>}]} {
    %c0 = arith.constant 0 : index
    %c0_0 = arith.constant 0 : index
    %0 = vector.load %arg1[%c0, %c0_0] : memref<16x4xf32, #tpu.memory_space<vmem>>, vector<16x4xf32>
    %c0_1 = arith.constant 0 : index
    %c0_2 = arith.constant 0 : index
    %1 = vector.load %arg2[%c0_1, %c0_2] : memref<4x32xf32, #tpu.memory_space<vmem>>, vector<4x32xf32>
    %cst = arith.constant dense<0.000000e+00> : vector<16x32xf32>
    %2 = tpu.matmul %0, %1, %cst {dimension_numbers = #tpu.dot_dimension_numbers<[1], [0], [0], [1], [0, 0, 1, 1], [], []>} : vector<16x4xf32>, vector<4x32xf32>, vector<16x32xf32> -> vector<16x32xf32>
    %c0_3 = arith.constant 0 : index
    %c0_4 = arith.constant 0 : index
    %3 = vector.load %arg3[%c0_3, %c0_4] : memref<1x32xf32, #tpu.memory_space<vmem>>, vector<1x32xf32>
    %4 = vector.broadcast %3 : vector<1x32xf32> to vector<16x32xf32>
    %5 = arith.addf %2, %4 : vector<16x32xf32>
    %c0_5 = arith.constant 0 : index
    %c0_6 = arith.constant 0 : index
    %6 = vector.load %arg4[%c0_5, %c0_6] : memref<16x32xf32, #tpu.memory_space<vmem>>, vector<16x32xf32>
    tpu.vector_store %arg4[%c0_5, %c0_6], %5 {strides = array<i32>} : memref<16x32xf32, #tpu.memory_space<vmem>>, vector<16x32xf32>,
    return
  }
  func.func @transform_0(%arg0: i32) -> (i32, i32) {
    %c0_i32 = arith.constant 0 : i32
    %c0_i32_0 = arith.constant 0 : i32
    return %arg0, %c0_i32 : i32, i32
  }
  func.func @transform_1(%arg0: i32) -> (i32, i32) {
    %c0_i32 = arith.constant 0 : i32
    %c0_i32_0 = arith.constant 0 : i32
    %c0_i32_1 = arith.constant 0 : i32
    return %c0_i32, %c0_i32_0 : i32, i32
  }
  func.func @transform_2(%arg0: i32) -> (i32, i32) {
    %c0_i32 = arith.constant 0 : i32
    %c0_i32_0 = arith.constant 0 : i32
    %c0_i32_1 = arith.constant 0 : i32
    return %c0_i32, %c0_i32_0 : i32, i32
  }
  func.func @transform_3(%arg0: i32) -> (i32, i32) {
    %c0_i32 = arith.constant 0 : i32
    %c0_i32_0 = arith.constant 0 : i32
    return %arg0, %c0_i32 : i32, i32
  }
}

module attributes {stable_mosaic.version = 11 : i64} {
  func.func @_recurrence_kernel(%arg0: i32, %arg1: memref<8x2x32xf32, #tpu.memory_space<vmem>>, %arg2: memref<32x32xf32, #tpu.memory_space<vmem>>, %arg3: memref<8x2x32xf32, #tpu.memory_space<vmem>>, %arg4: memref<2x32xf32, #tpu.memory_space<vmem>>) attributes {dimension_semantics = [#tpu.dimension_semantics<arbitrary>], iteration_bounds = array<i64: 1>, scalar_prefetch = 0 : i64, scratch_operands = 1 : i64, tpu.core_type = #tpu.core_type<tc>, window_params = [{transform_indices = @transform_0, window_bounds = array<i64: 8, 2, 32>}, {pipeline_mode = #tpu.pipeline_mode<synchronous>, transform_indices = @transform_1, window_bounds = array<i64: 32, 32>}, {transform_indices = @transform_2, window_bounds = array<i64: 8, 2, 32>}]} {
    %c0_i32 = arith.constant 0 : i32
    %0 = arith.cmpi eq, %arg0, %c0_i32 : i32
    %1 = arith.extui %0 : i1 to i32
    %c0_i32_0 = arith.constant 0 : i32
    %2 = arith.cmpi ne, %1, %c0_i32_0 : i32
    scf.if %2 {
      %cst_60 = arith.constant 0.000000e+00 : f32
      %93 = vector.broadcast %cst_60 : f32 to vector<2x32xf32>
      %c0_61 = arith.constant 0 : index
      %c0_62 = arith.constant 0 : index
      %94 = vector.load %arg4[%c0_61, %c0_62] : memref<2x32xf32, #tpu.memory_space<vmem>>, vector<2x32xf32>
      tpu.vector_store %arg4[%c0_61, %c0_62], %93 {strides = array<i32>} : memref<2x32xf32, #tpu.memory_space<vmem>>, vector<2x32xf32>,
    } else {
    }
    %c0 = arith.constant 0 : index
    %c0_1 = arith.constant 0 : index
    %3 = vector.load %arg4[%c0, %c0_1] : memref<2x32xf32, #tpu.memory_space<vmem>>, vector<2x32xf32>
    %c0_i32_2 = arith.constant 0 : i32
    %4 = arith.index_cast %c0_i32_2 : i32 to index
    %c0_3 = arith.constant 0 : index
    %c0_4 = arith.constant 0 : index
    %5 = vector.load %arg1[%4, %c0_3, %c0_4] : memref<8x2x32xf32, #tpu.memory_space<vmem>>, vector<1x2x32xf32>
    %6 = vector.shape_cast %5 : vector<1x2x32xf32> to vector<2x32xf32>
    %c0_5 = arith.constant 0 : index
    %c0_6 = arith.constant 0 : index
    %7 = vector.load %arg2[%c0_5, %c0_6] : memref<32x32xf32, #tpu.memory_space<vmem>>, vector<32x32xf32>
    %cst = arith.constant dense<0.000000e+00> : vector<2x32xf32>
    %8 = tpu.matmul %3, %7, %cst {dimension_numbers = #tpu.dot_dimension_numbers<[1], [0], [0], [1], [0, 0, 1, 1], [], []>} : vector<2x32xf32>, vector<32x32xf32>, vector<2x32xf32> -> vector<2x32xf32>
    %9 = arith.addf %6, %8 : vector<2x32xf32>
    %10 = math.tanh %9 : vector<2x32xf32>
    %11 = arith.index_cast %c0_i32_2 : i32 to index
    %c0_7 = arith.constant 0 : index
    %c0_8 = arith.constant 0 : index
    %12 = vector.load %arg3[%11, %c0_7, %c0_8] : memref<8x2x32xf32, #tpu.memory_space<vmem>>, vector<1x2x32xf32>
    %13 = vector.shape_cast %12 : vector<1x2x32xf32> to vector<2x32xf32>
    %14 = vector.shape_cast %10 : vector<2x32xf32> to vector<1x2x32xf32>
    tpu.vector_store %arg3[%11, %c0_7, %c0_8], %14 {strides = array<i32>} : memref<8x2x32xf32, #tpu.memory_space<vmem>>, vector<1x2x32xf32>,
    %c1_i32 = arith.constant 1 : i32
    %15 = arith.index_cast %c1_i32 : i32 to index
    %c0_9 = arith.constant 0 : index
    %c0_10 = arith.constant 0 : index
    %16 = vector.load %arg1[%15, %c0_9, %c0_10] : memref<8x2x32xf32, #tpu.memory_space<vmem>>, vector<1x2x32xf32>
    %17 = vector.shape_cast %16 : vector<1x2x32xf32> to vector<2x32xf32>
    %c0_11 = arith.constant 0 : index
    %c0_12 = arith.constant 0 : index
    %18 = vector.load %arg2[%c0_11, %c0_12] : memref<32x32xf32, #tpu.memory_space<vmem>>, vector<32x32xf32>
    %cst_13 = arith.constant dense<0.000000e+00> : vector<2x32xf32>
    %19 = tpu.matmul %10, %18, %cst_13 {dimension_numbers = #tpu.dot_dimension_numbers<[1], [0], [0], [1], [0, 0, 1, 1], [], []>} : vector<2x32xf32>, vector<32x32xf32>, vector<2x32xf32> -> vector<2x32xf32>
    %20 = arith.addf %17, %19 : vector<2x32xf32>
    %21 = math.tanh %20 : vector<2x32xf32>
    %22 = arith.index_cast %c1_i32 : i32 to index
    %c0_14 = arith.constant 0 : index
    %c0_15 = arith.constant 0 : index
    %23 = vector.load %arg3[%22, %c0_14, %c0_15] : memref<8x2x32xf32, #tpu.memory_space<vmem>>, vector<1x2x32xf32>
    %24 = vector.shape_cast %23 : vector<1x2x32xf32> to vector<2x32xf32>
    %25 = vector.shape_cast %21 : vector<2x32xf32> to vector<1x2x32xf32>
    tpu.vector_store %arg3[%22, %c0_14, %c0_15], %25 {strides = array<i32>} : memref<8x2x32xf32, #tpu.memory_space<vmem>>, vector<1x2x32xf32>,
    %c2_i32 = arith.constant 2 : i32
    %26 = arith.index_cast %c2_i32 : i32 to index
    %c0_16 = arith.constant 0 : index
    %c0_17 = arith.constant 0 : index
    %27 = vector.load %arg1[%26, %c0_16, %c0_17] : memref<8x2x32xf32, #tpu.memory_space<vmem>>, vector<1x2x32xf32>
    %28 = vector.shape_cast %27 : vector<1x2x32xf32> to vector<2x32xf32>
    %c0_18 = arith.constant 0 : index
    %c0_19 = arith.constant 0 : index
    %29 = vector.load %arg2[%c0_18, %c0_19] : memref<32x32xf32, #tpu.memory_space<vmem>>, vector<32x32xf32>
    %cst_20 = arith.constant dense<0.000000e+00> : vector<2x32xf32>
    %30 = tpu.matmul %21, %29, %cst_20 {dimension_numbers = #tpu.dot_dimension_numbers<[1], [0], [0], [1], [0, 0, 1, 1], [], []>} : vector<2x32xf32>, vector<32x32xf32>, vector<2x32xf32> -> vector<2x32xf32>
    %31 = arith.addf %28, %30 : vector<2x32xf32>
    %32 = math.tanh %31 : vector<2x32xf32>
    %33 = arith.index_cast %c2_i32 : i32 to index
    %c0_21 = arith.constant 0 : index
    %c0_22 = arith.constant 0 : index
    %34 = vector.load %arg3[%33, %c0_21, %c0_22] : memref<8x2x32xf32, #tpu.memory_space<vmem>>, vector<1x2x32xf32>
    %35 = vector.shape_cast %34 : vector<1x2x32xf32> to vector<2x32xf32>
    %36 = vector.shape_cast %32 : vector<2x32xf32> to vector<1x2x32xf32>
    tpu.vector_store %arg3[%33, %c0_21, %c0_22], %36 {strides = array<i32>} : memref<8x2x32xf32, #tpu.memory_space<vmem>>, vector<1x2x32xf32>,
    %c3_i32 = arith.constant 3 : i32
    %37 = arith.index_cast %c3_i32 : i32 to index
    %c0_23 = arith.constant 0 : index
    %c0_24 = arith.constant 0 : index
    %38 = vector.load %arg1[%37, %c0_23, %c0_24] : memref<8x2x32xf32, #tpu.memory_space<vmem>>, vector<1x2x32xf32>
    %39 = vector.shape_cast %38 : vector<1x2x32xf32> to vector<2x32xf32>
    %c0_25 = arith.constant 0 : index
    %c0_26 = arith.constant 0 : index
    %40 = vector.load %arg2[%c0_25, %c0_26] : memref<32x32xf32, #tpu.memory_space<vmem>>, vector<32x32xf32>
    %cst_27 = arith.constant dense<0.000000e+00> : vector<2x32xf32>
    %41 = tpu.matmul %32, %40, %cst_27 {dimension_numbers = #tpu.dot_dimension_numbers<[1], [0], [0], [1], [0, 0, 1, 1], [], []>} : vector<2x32xf32>, vector<32x32xf32>, vector<2x32xf32> -> vector<2x32xf32>
    %42 = arith.addf %39, %41 : vector<2x32xf32>
    %43 = math.tanh %42 : vector<2x32xf32>
    %44 = arith.index_cast %c3_i32 : i32 to index
    %c0_28 = arith.constant 0 : index
    %c0_29 = arith.constant 0 : index
    %45 = vector.load %arg3[%44, %c0_28, %c0_29] : memref<8x2x32xf32, #tpu.memory_space<vmem>>, vector<1x2x32xf32>
    %46 = vector.shape_cast %45 : vector<1x2x32xf32> to vector<2x32xf32>
    %47 = vector.shape_cast %43 : vector<2x32xf32> to vector<1x2x32xf32>
    tpu.vector_store %arg3[%44, %c0_28, %c0_29], %47 {strides = array<i32>} : memref<8x2x32xf32, #tpu.memory_space<vmem>>, vector<1x2x32xf32>,
    %c4_i32 = arith.constant 4 : i32
    %48 = arith.index_cast %c4_i32 : i32 to index
    %c0_30 = arith.constant 0 : index
    %c0_31 = arith.constant 0 : index
    %49 = vector.load %arg1[%48, %c0_30, %c0_31] : memref<8x2x32xf32, #tpu.memory_space<vmem>>, vector<1x2x32xf32>
    %50 = vector.shape_cast %49 : vector<1x2x32xf32> to vector<2x32xf32>
    %c0_32 = arith.constant 0 : index
    %c0_33 = arith.constant 0 : index
    %51 = vector.load %arg2[%c0_32, %c0_33] : memref<32x32xf32, #tpu.memory_space<vmem>>, vector<32x32xf32>
    %cst_34 = arith.constant dense<0.000000e+00> : vector<2x32xf32>
    %52 = tpu.matmul %43, %51, %cst_34 {dimension_numbers = #tpu.dot_dimension_numbers<[1], [0], [0], [1], [0, 0, 1, 1], [], []>} : vector<2x32xf32>, vector<32x32xf32>, vector<2x32xf32> -> vector<2x32xf32>
    %53 = arith.addf %50, %52 : vector<2x32xf32>
    %54 = math.tanh %53 : vector<2x32xf32>
    %55 = arith.index_cast %c4_i32 : i32 to index
    %c0_35 = arith.constant 0 : index
    %c0_36 = arith.constant 0 : index
    %56 = vector.load %arg3[%55, %c0_35, %c0_36] : memref<8x2x32xf32, #tpu.memory_space<vmem>>, vector<1x2x32xf32>
    %57 = vector.shape_cast %56 : vector<1x2x32xf32> to vector<2x32xf32>
    %58 = vector.shape_cast %54 : vector<2x32xf32> to vector<1x2x32xf32>
    tpu.vector_store %arg3[%55, %c0_35, %c0_36], %58 {strides = array<i32>} : memref<8x2x32xf32, #tpu.memory_space<vmem>>, vector<1x2x32xf32>,
    %c5_i32 = arith.constant 5 : i32
    %59 = arith.index_cast %c5_i32 : i32 to index
    %c0_37 = arith.constant 0 : index
    %c0_38 = arith.constant 0 : index
    %60 = vector.load %arg1[%59, %c0_37, %c0_38] : memref<8x2x32xf32, #tpu.memory_space<vmem>>, vector<1x2x32xf32>
    %61 = vector.shape_cast %60 : vector<1x2x32xf32> to vector<2x32xf32>
    %c0_39 = arith.constant 0 : index
    %c0_40 = arith.constant 0 : index
    %62 = vector.load %arg2[%c0_39, %c0_40] : memref<32x32xf32, #tpu.memory_space<vmem>>, vector<32x32xf32>
    %cst_41 = arith.constant dense<0.000000e+00> : vector<2x32xf32>
    %63 = tpu.matmul %54, %62, %cst_41 {dimension_numbers = #tpu.dot_dimension_numbers<[1], [0], [0], [1], [0, 0, 1, 1], [], []>} : vector<2x32xf32>, vector<32x32xf32>, vector<2x32xf32> -> vector<2x32xf32>
    %64 = arith.addf %61, %63 : vector<2x32xf32>
    %65 = math.tanh %64 : vector<2x32xf32>
    %66 = arith.index_cast %c5_i32 : i32 to index
    %c0_42 = arith.constant 0 : index
    %c0_43 = arith.constant 0 : index
    %67 = vector.load %arg3[%66, %c0_42, %c0_43] : memref<8x2x32xf32, #tpu.memory_space<vmem>>, vector<1x2x32xf32>
    %68 = vector.shape_cast %67 : vector<1x2x32xf32> to vector<2x32xf32>
    %69 = vector.shape_cast %65 : vector<2x32xf32> to vector<1x2x32xf32>
    tpu.vector_store %arg3[%66, %c0_42, %c0_43], %69 {strides = array<i32>} : memref<8x2x32xf32, #tpu.memory_space<vmem>>, vector<1x2x32xf32>,
    %c6_i32 = arith.constant 6 : i32
    %70 = arith.index_cast %c6_i32 : i32 to index
    %c0_44 = arith.constant 0 : index
    %c0_45 = arith.constant 0 : index
    %71 = vector.load %arg1[%70, %c0_44, %c0_45] : memref<8x2x32xf32, #tpu.memory_space<vmem>>, vector<1x2x32xf32>
    %72 = vector.shape_cast %71 : vector<1x2x32xf32> to vector<2x32xf32>
    %c0_46 = arith.constant 0 : index
    %c0_47 = arith.constant 0 : index
    %73 = vector.load %arg2[%c0_46, %c0_47] : memref<32x32xf32, #tpu.memory_space<vmem>>, vector<32x32xf32>
    %cst_48 = arith.constant dense<0.000000e+00> : vector<2x32xf32>
    %74 = tpu.matmul %65, %73, %cst_48 {dimension_numbers = #tpu.dot_dimension_numbers<[1], [0], [0], [1], [0, 0, 1, 1], [], []>} : vector<2x32xf32>, vector<32x32xf32>, vector<2x32xf32> -> vector<2x32xf32>
    %75 = arith.addf %72, %74 : vector<2x32xf32>
    %76 = math.tanh %75 : vector<2x32xf32>
    %77 = arith.index_cast %c6_i32 : i32 to index
    %c0_49 = arith.constant 0 : index
    %c0_50 = arith.constant 0 : index
    %78 = vector.load %arg3[%77, %c0_49, %c0_50] : memref<8x2x32xf32, #tpu.memory_space<vmem>>, vector<1x2x32xf32>
    %79 = vector.shape_cast %78 : vector<1x2x32xf32> to vector<2x32xf32>
    %80 = vector.shape_cast %76 : vector<2x32xf32> to vector<1x2x32xf32>
    tpu.vector_store %arg3[%77, %c0_49, %c0_50], %80 {strides = array<i32>} : memref<8x2x32xf32, #tpu.memory_space<vmem>>, vector<1x2x32xf32>,
    %c7_i32 = arith.constant 7 : i32
    %81 = arith.index_cast %c7_i32 : i32 to index
    %c0_51 = arith.constant 0 : index
    %c0_52 = arith.constant 0 : index
    %82 = vector.load %arg1[%81, %c0_51, %c0_52] : memref<8x2x32xf32, #tpu.memory_space<vmem>>, vector<1x2x32xf32>
    %83 = vector.shape_cast %82 : vector<1x2x32xf32> to vector<2x32xf32>
    %c0_53 = arith.constant 0 : index
    %c0_54 = arith.constant 0 : index
    %84 = vector.load %arg2[%c0_53, %c0_54] : memref<32x32xf32, #tpu.memory_space<vmem>>, vector<32x32xf32>
    %cst_55 = arith.constant dense<0.000000e+00> : vector<2x32xf32>
    %85 = tpu.matmul %76, %84, %cst_55 {dimension_numbers = #tpu.dot_dimension_numbers<[1], [0], [0], [1], [0, 0, 1, 1], [], []>} : vector<2x32xf32>, vector<32x32xf32>, vector<2x32xf32> -> vector<2x32xf32>
    %86 = arith.addf %83, %85 : vector<2x32xf32>
    %87 = math.tanh %86 : vector<2x32xf32>
    %88 = arith.index_cast %c7_i32 : i32 to index
    %c0_56 = arith.constant 0 : index
    %c0_57 = arith.constant 0 : index
    %89 = vector.load %arg3[%88, %c0_56, %c0_57] : memref<8x2x32xf32, #tpu.memory_space<vmem>>, vector<1x2x32xf32>
    %90 = vector.shape_cast %89 : vector<1x2x32xf32> to vector<2x32xf32>
    %91 = vector.shape_cast %87 : vector<2x32xf32> to vector<1x2x32xf32>
    tpu.vector_store %arg3[%88, %c0_56, %c0_57], %91 {strides = array<i32>} : memref<8x2x32xf32, #tpu.memory_space<vmem>>, vector<1x2x32xf32>,
    %c8_i32 = arith.constant 8 : i32
    %c0_58 = arith.constant 0 : index
    %c0_59 = arith.constant 0 : index
    %92 = vector.load %arg4[%c0_58, %c0_59] : memref<2x32xf32, #tpu.memory_space<vmem>>, vector<2x32xf32>
    tpu.vector_store %arg4[%c0_58, %c0_59], %87 {strides = array<i32>} : memref<2x32xf32, #tpu.memory_space<vmem>>, vector<2x32xf32>,
    return
  }
  func.func @transform_0(%arg0: i32) -> (i32, i32, i32) {
    %c0_i32 = arith.constant 0 : i32
    %c0_i32_0 = arith.constant 0 : i32
    %c0_i32_1 = arith.constant 0 : i32
    return %arg0, %c0_i32, %c0_i32_0 : i32, i32, i32
  }
  func.func @transform_1(%arg0: i32) -> (i32, i32) {
    %c0_i32 = arith.constant 0 : i32
    %c0_i32_0 = arith.constant 0 : i32
    %c0_i32_1 = arith.constant 0 : i32
    return %c0_i32, %c0_i32_0 : i32, i32
  }
  func.func @transform_2(%arg0: i32) -> (i32, i32, i32) {
    %c0_i32 = arith.constant 0 : i32
    %c0_i32_0 = arith.constant 0 : i32
    %c0_i32_1 = arith.constant 0 : i32
    return %arg0, %c0_i32, %c0_i32_0 : i32, i32, i32
  }
}

</mosaic_0001>

<llo_original>
// kernel: random_rnn_forward.2
$region0: #{random_rnn_forward.2}
  #allocation0 [shape = 'u32[]', space=smem, size = 0x4, offset = 0x4, fixed_abs, tag = 'smem constant byte address 0x4 - core index']
  #allocation1 [shape = 'u32[144,128]{1,0:T(1,128)}', space=vmem, size = 0x12000, scoped, tag = 'internal scratch']
  %s0 = inlined_call_operand.vmem [shape: f32[16,4], index: 0, kind: input, shape index: {}]
  %s1 = inlined_call_operand.vmem [shape: f32[4,32], index: 1, kind: input, shape index: {}]
  %s2 = inlined_call_operand.vmem [shape: f32[1,32], index: 2, kind: input, shape index: {}]
  %s3 = inlined_call_operand.vmem [shape: f32[16,32], index: 3, kind: output, shape index: {}]
  %s4 = sld [smem:[#allocation0]]
  $region22: #{random_rnn_forward.2} parent=0
    _
  %s6 = ssub.s32 1, %s4
  %s7 = scalar_select 0, %s6, %s4
  // Predicated region
  $region2: #{random_rnn_forward.2} parent=0 // pred_check
    _
  $region3: #{random_rnn_forward.2} parent=0 // pred_check_branch
    %9 = sbr.rel (0) target = $region5
  $region4: #{random_rnn_forward.2} parent=0 // pred_region
    _
  $region5: #{random_rnn_forward.2} parent=0 // pred_fallthru
    _
  // Predicated region
  $region6: #{random_rnn_forward.2} parent=0 // pred_check
    _
  $region7: #{random_rnn_forward.2} parent=0 // pred_check_branch
    %11 = sbr.rel (0) target = $region9
  $region8: #{random_rnn_forward.2} parent=0 // pred_region
    _
  $region9: #{random_rnn_forward.2} parent=0 // pred_fallthru
    _
  // Predicated region
  $region10: #{random_rnn_forward.2} parent=0 // pred_check
    _
  $region11: #{random_rnn_forward.2} parent=0 // pred_check_branch
    %13 = sbr.rel (0) target = $region13
  $region12: #{random_rnn_forward.2} parent=0 // pred_region
    _
  $region13: #{random_rnn_forward.2} parent=0 // pred_fallthru
    _
  %v14 = vld [vmem:[%s0] sm:$0xff]
  %v15 = vld [vmem:[%s0 + $0x8] sm:$0xff]
  %v16 = vld [vmem:[%s1] sm:$0xf]
  %v17 = vld [vmem:[%s2] sm:$0x1]
  %v19 = vlaneseq
  %v20 = vshrl.u32 %v19, 7
  %v21 = vsub.s32 0, %v20
  %v22 = vrot.slane %v17, %v21
  %vm24 = vcmask 31744
  %v26 = vsel %vm24, %v14, 0
  %v29 = vsel %vm24, %v15, 0
  %vm31 = vcmask 1043456
  %v33 = vsel %vm31, %v16, 0
  %35 = vmatprep.subr.mxu0 0.0
  %36 = vmatpush1.msra.mxu0 0.0
  %37 = vmatprep.subr.mxu0 0.0
  %38 = vmatpush1.msra.mxu0 0.0
  %39 = vmatprep.subr.mxu0 0.0
  %40 = vmatpush1.msra.mxu0 0.0
  %41 = vmatprep.subr.mxu0 0.0
  %42 = vmatpush1.msra.mxu0 0.0
  %43 = vmatprep.subr.mxu0 0.0
  %44 = vmatpush1.msra.mxu0 0.0
  %45 = vmatprep.subr.mxu0 0.0
  %46 = vmatpush1.msra.mxu0 0.0
  %47 = vmatprep.subr.mxu0 0.0
  %48 = vmatpush1.msra.mxu0 0.0
  %49 = vmatprep.subr.mxu0 0.0
  %50 = vmatpush1.msra.mxu0 0.0
  %51 = vmatprep.subr.mxu0 0.0
  %52 = vmatpush1.msra.mxu0 0.0
  %53 = vmatprep.subr.mxu0 0.0
  %54 = vmatpush1.msra.mxu0 0.0
  %55 = vmatprep.subr.mxu0 0.0
  %56 = vmatpush1.msra.mxu0 0.0
  %57 = vmatprep.subr.mxu0 0.0
  %58 = vmatpush1.msra.mxu0 0.0
  %59 = vmatprep.subr.mxu0 0.0
  %60 = vmatpush1.msra.mxu0 0.0
  %61 = vmatprep.subr.mxu0 0.0
  %62 = vmatpush1.msra.mxu0 0.0
  %63 = vmatprep.subr.mxu0 0.0
  %64 = vmatpush1.msra.mxu0 0.0
  %65 = vmatprep.subr.mxu0 0.0
  %66 = vmatpush1.msra.mxu0 %v33
  %67 = vmatprep.subr.mxu0 0.0
  %68 = vmatpush2.msra.mxu0 0.0
  %69 = vmatprep.subr.mxu0 0.0
  %70 = vmatpush2.msra.mxu0 0.0
  %71 = vmatprep.subr.mxu0 0.0
  %72 = vmatpush2.msra.mxu0 0.0
  %73 = vmatprep.subr.mxu0 0.0
  %74 = vmatpush2.msra.mxu0 0.0
  %75 = vmatprep.subr.mxu0 0.0
  %76 = vmatpush2.msra.mxu0 0.0
  %77 = vmatprep.subr.mxu0 0.0
  %78 = vmatpush2.msra.mxu0 0.0
  %79 = vmatprep.subr.mxu0 0.0
  %80 = vmatpush2.msra.mxu0 0.0
  %81 = vmatprep.subr.mxu0 0.0
  %82 = vmatpush2.msra.mxu0 0.0
  %83 = vmatprep.subr.mxu0 0.0
  %84 = vmatpush2.msra.mxu0 0.0
  %85 = vmatprep.subr.mxu0 0.0
  %86 = vmatpush2.msra.mxu0 0.0
  %87 = vmatprep.subr.mxu0 0.0
  %88 = vmatpush2.msra.mxu0 0.0
  %89 = vmatprep.subr.mxu0 0.0
  %90 = vmatpush2.msra.mxu0 0.0
  %91 = vmatprep.subr.mxu0 0.0
  %92 = vmatpush2.msra.mxu0 0.0
  %93 = vmatprep.subr.mxu0 0.0
  %94 = vmatpush2.msra.mxu0 0.0
  %95 = vmatprep.subr.mxu0 0.0
  %96 = vmatpush2.msra.mxu0 0.0
  %97 = vmatprep.subr.mxu0 0.0
  %98 = vmatpush2.msra.mxu0 0.0
  %99 = vmatprep.mubr.f32.mxu0 0.0
  %100 = vmatmul.mubr.f32.gmra.mxu0 %v26
  %v101 = vpop.f32.mrf.mxu0
  %v102 = vadd.f32 %v22, %v101
  %v103 = vpop.f32.mrf.mxu0
  %104 = vmatprep.mubr.f32.mxu0 0.0
  %105 = vmatmul.mubr.f32.gmra.mxu0 %v29
  %v106 = vpop.f32.mrf.mxu0
  %v107 = vadd.f32 %v22, %v106
  %v108 = vpop.f32.mrf.mxu0
  %109 = vdwg.mxu0
  %vm110 = vcmask 261120
  %111 = vst.msk [vmem:[%s3] sm:$0xff] %vm110, %v102
  %112 = vst.msk [vmem:[%s3 + $0x8] sm:$0xff] %vm110, %v107
  // Predicated region
  $region14: #{random_rnn_forward.2} parent=0 // pred_check
    _
  $region15: #{random_rnn_forward.2} parent=0 // pred_check_branch
    %114 = sbr.rel (0) target = $region17
  $region16: #{random_rnn_forward.2} parent=0 // pred_region
    _
  $region17: #{random_rnn_forward.2} parent=0 // pred_fallthru
    _
  // Predicated region
  $region18: #{random_rnn_forward.2} parent=0 // pred_check
    _
  $region19: #{random_rnn_forward.2} parent=0 // pred_check_branch
    %116 = sbr.rel (0) target = $region21
  $region20: #{random_rnn_forward.2} parent=0 // pred_region
    _
  $region21: #{random_rnn_forward.2} parent=0 // pred_fallthru
    _

// kernel: random_rnn_forward.3
$region0: #{random_rnn_forward.3}
  #allocation0 [shape = 'u32[]', space=smem, size = 0x4, offset = 0x4, fixed_abs, tag = 'smem constant byte address 0x4 - core index']
  #allocation1 [shape = 'u32[144,128]{1,0:T(1,128)}', space=vmem, size = 0x12000, scoped, tag = 'internal scratch']
  #allocation2 [shape = 'f32[2,32]{1,0:T(2,128)}', space=vmem, size = 0x400, scoped, tag = 'scratch operand']
  %s0 = inlined_call_operand.vmem [shape: f32[8,2,32], index: 0, kind: input, shape index: {}]
  %s1 = inlined_call_operand.vmem [shape: f32[32,32], index: 1, kind: input, shape index: {}]
  %s2 = inlined_call_operand.hbm [shape: f32[8,2,32], index: 2, kind: output, shape index: {}]
  %s3 = sld [smem:[#allocation0]]
  $region22: #{random_rnn_forward.3} parent=0
    _
  %s5 = ssub.s32 1, %s3
  %s6 = scalar_select 0, %s5, %s3
  $region1: #{random_rnn_forward.3} parent=0
    #allocation3 [shape = 'u8[8192]{0}', space=vmem, size = 0x2000, scoped, tag = 'output window, operand 0, single buffered']
    #allocation4 [shape = 's32[1]{0}', space=sflag, size = 0x4, scoped, tag = 'scoped memory for random_rnn_forward.3']
    %7 = vsyncpa [#allocation4], 0
    // Predicated region
    $region2: #{random_rnn_forward.3} parent=1 // pred_check
      _
    $region3: #{random_rnn_forward.3} parent=1 // pred_check_branch
      %9 = sbr.rel (0) target = $region5
    $region4: #{random_rnn_forward.3} parent=1 // pred_region
      _
    $region5: #{random_rnn_forward.3} parent=1 // pred_fallthru
      _
    // Predicated region
    $region6: #{random_rnn_forward.3} parent=1 // pred_check
      _
    $region7: #{random_rnn_forward.3} parent=1 // pred_check_branch
      %11 = sbr.rel (0) target = $region9
    $region8: #{random_rnn_forward.3} parent=1 // pred_region
      _
    $region9: #{random_rnn_forward.3} parent=1 // pred_fallthru
      _
    %p12 = scmp.eq.s32.totalorder 0, 0
    // Predicated region
    $region10: #{random_rnn_forward.3} parent=1 // pred_check
      %p13 = pneg %p12
    $region11: #{random_rnn_forward.3} parent=1 // pred_check_branch
      %15 = sbr.rel (%p13) target = $region13
    $region12: #{random_rnn_forward.3} parent=1 // pred_region
      %vm16 = vcmask 254976
      %17 = vst.msk [vmem:[#allocation2] sm:$0x3] %vm16, 0.0
    $region13: #{random_rnn_forward.3} parent=1 // pred_fallthru
      _
    %v18 = vld [vmem:[#allocation2] sm:$0x3]
    %v19 = vld [vmem:[%s0] sm:$0x3]
    %v20 = vld [vmem:[%s1] sm:$0xff]
    %v21 = vld [vmem:[%s1 + $0x8] sm:$0xff]
    %v22 = vld [vmem:[%s1 + $0x10] sm:$0xff]
    %v23 = vld [vmem:[%s1 + $0x18] sm:$0xff]
    %vm24 = vcmask 261120
    %v26 = vsel %vm24, %v18, 0
    %28 = vmatprep.subr.mxu0 0.0
    %29 = vmatpush1.msra.mxu0 0.0
    %30 = vmatprep.subr.mxu0 0.0
    %31 = vmatpush1.msra.mxu0 0.0
    %32 = vmatprep.subr.mxu0 0.0
    %33 = vmatpush1.msra.mxu0 0.0
    %34 = vmatprep.subr.mxu0 0.0
    %35 = vmatpush1.msra.mxu0 0.0
    %36 = vmatprep.subr.mxu0 0.0
    %37 = vmatpush1.msra.mxu0 0.0
    %38 = vmatprep.subr.mxu0 0.0
    %39 = vmatpush1.msra.mxu0 0.0
    %40 = vmatprep.subr.mxu0 0.0
    %41 = vmatpush1.msra.mxu0 0.0
    %42 = vmatprep.subr.mxu0 0.0
    %43 = vmatpush1.msra.mxu0 0.0
    %44 = vmatprep.subr.mxu0 0.0
    %45 = vmatpush1.msra.mxu0 0.0
    %46 = vmatprep.subr.mxu0 0.0
    %47 = vmatpush1.msra.mxu0 0.0
    %48 = vmatprep.subr.mxu0 0.0
    %49 = vmatpush1.msra.mxu0 0.0
    %50 = vmatprep.subr.mxu0 0.0
    %51 = vmatpush1.msra.mxu0 0.0
    %52 = vmatprep.subr.mxu0 0.0
    %53 = vmatpush1.msra.mxu0 %v23
    %54 = vmatprep.subr.mxu0 0.0
    %55 = vmatpush1.msra.mxu0 %v22
    %56 = vmatprep.subr.mxu0 0.0
    %57 = vmatpush1.msra.mxu0 %v21
    %58 = vmatprep.subr.mxu0 0.0
    %59 = vmatpush1.msra.mxu0 %v20
    %60 = vmatprep.subr.mxu0 0.0
    %61 = vmatpush2.msra.mxu0 0.0
    %62 = vmatprep.subr.mxu0 0.0
    %63 = vmatpush2.msra.mxu0 0.0
    %64 = vmatprep.subr.mxu0 0.0
    %65 = vmatpush2.msra.mxu0 0.0
    %66 = vmatprep.subr.mxu0 0.0
    %67 = vmatpush2.msra.mxu0 0.0
    %68 = vmatprep.subr.mxu0 0.0
    %69 = vmatpush2.msra.mxu0 0.0
    %70 = vmatprep.subr.mxu0 0.0
    %71 = vmatpush2.msra.mxu0 0.0
    %72 = vmatprep.subr.mxu0 0.0
    %73 = vmatpush2.msra.mxu0 0.0
    %74 = vmatprep.subr.mxu0 0.0
    %75 = vmatpush2.msra.mxu0 0.0
    %76 = vmatprep.subr.mxu0 0.0
    %77 = vmatpush2.msra.mxu0 0.0
    %78 = vmatprep.subr.mxu0 0.0
    %79 = vmatpush2.msra.mxu0 0.0
    %80 = vmatprep.subr.mxu0 0.0
    %81 = vmatpush2.msra.mxu0 0.0
    %82 = vmatprep.subr.mxu0 0.0
    %83 = vmatpush2.msra.mxu0 0.0
    %84 = vmatprep.subr.mxu0 0.0
    %85 = vmatpush2.msra.mxu0 0.0
    %86 = vmatprep.subr.mxu0 0.0
    %87 = vmatpush2.msra.mxu0 0.0
    %88 = vmatprep.subr.mxu0 0.0
    %89 = vmatpush2.msra.mxu0 0.0
    %90 = vmatprep.subr.mxu0 0.0
    %91 = vmatpush2.msra.mxu0 0.0
    %92 = vmatprep.mubr.f32.mxu0 0.0
    %93 = vmatmul.mubr.f32.gmra.mxu0 %v26
    %v94 = vpop.f32.mrf.mxu0
    %v95 = vadd.f32 0.0, %v94
    %v96 = vpop.f32.mrf.mxu0
    %97 = vdwg.mxu0
    %v98 = vadd.f32 %v19, %v95
    %v99 = vtanh.pop %v98
    %vm100 = vcmask 254976
    %101 = vst.msk [vmem:[#allocation3] sm:$0x3] %vm100, %v99
    %s102 = scalar_lea.vmem %s0, 2
    %v103 = vld [vmem:[%s102] sm:$0x3]
    %v104 = vld [vmem:[%s1] sm:$0xff]
    %v105 = vld [vmem:[%s1 + $0x8] sm:$0xff]
    %v106 = vld [vmem:[%s1 + $0x10] sm:$0xff]
    %v107 = vld [vmem:[%s1 + $0x18] sm:$0xff]
    %v109 = vsel %vm24, %v99, 0
    %111 = vmatprep.subr.mxu0 0.0
    %112 = vmatpush1.msra.mxu0 0.0
    %113 = vmatprep.subr.mxu0 0.0
    %114 = vmatpush1.msra.mxu0 0.0
    %115 = vmatprep.subr.mxu0 0.0
    %116 = vmatpush1.msra.mxu0 0.0
    %117 = vmatprep.subr.mxu0 0.0
    %118 = vmatpush1.msra.mxu0 0.0
    %119 = vmatprep.subr.mxu0 0.0
    %120 = vmatpush1.msra.mxu0 0.0
    %121 = vmatprep.subr.mxu0 0.0
    %122 = vmatpush1.msra.mxu0 0.0
    %123 = vmatprep.subr.mxu0 0.0
    %124 = vmatpush1.msra.mxu0 0.0
    %125 = vmatprep.subr.mxu0 0.0
    %126 = vmatpush1.msra.mxu0 0.0
    %127 = vmatprep.subr.mxu0 0.0
    %128 = vmatpush1.msra.mxu0 0.0
    %129 = vmatprep.subr.mxu0 0.0
    %130 = vmatpush1.msra.mxu0 0.0
    %131 = vmatprep.subr.mxu0 0.0
    %132 = vmatpush1.msra.mxu0 0.0
    %133 = vmatprep.subr.mxu0 0.0
    %134 = vmatpush1.msra.mxu0 0.0
    %135 = vmatprep.subr.mxu0 0.0
    %136 = vmatpush1.msra.mxu0 %v107
    %137 = vmatprep.subr.mxu0 0.0
    %138 = vmatpush1.msra.mxu0 %v106
    %139 = vmatprep.subr.mxu0 0.0
    %140 = vmatpush1.msra.mxu0 %v105
    %141 = vmatprep.subr.mxu0 0.0
    %142 = vmatpush1.msra.mxu0 %v104
    %143 = vmatprep.subr.mxu0 0.0
    %144 = vmatpush2.msra.mxu0 0.0
    %145 = vmatprep.subr.mxu0 0.0
    %146 = vmatpush2.msra.mxu0 0.0
    %147 = vmatprep.subr.mxu0 0.0
    %148 = vmatpush2.msra.mxu0 0.0
    %149 = vmatprep.subr.mxu0 0.0
    %150 = vmatpush2.msra.mxu0 0.0
    %151 = vmatprep.subr.mxu0 0.0
    %152 = vmatpush2.msra.mxu0 0.0
    %153 = vmatprep.subr.mxu0 0.0
    %154 = vmatpush2.msra.mxu0 0.0
    %155 = vmatprep.subr.mxu0 0.0
    %156 = vmatpush2.msra.mxu0 0.0
    %157 = vmatprep.subr.mxu0 0.0
    %158 = vmatpush2.msra.mxu0 0.0
    %159 = vmatprep.subr.mxu0 0.0
    %160 = vmatpush2.msra.mxu0 0.0
    %161 = vmatprep.subr.mxu0 0.0
    %162 = vmatpush2.msra.mxu0 0.0
    %163 = vmatprep.subr.mxu0 0.0
    %164 = vmatpush2.msra.mxu0 0.0
    %165 = vmatprep.subr.mxu0 0.0
    %166 = vmatpush2.msra.mxu0 0.0
    %167 = vmatprep.subr.mxu0 0.0
    %168 = vmatpush2.msra.mxu0 0.0
    %169 = vmatprep.subr.mxu0 0.0
    %170 = vmatpush2.msra.mxu0 0.0
    %171 = vmatprep.subr.mxu0 0.0
    %172 = vmatpush2.msra.mxu0 0.0
    %173 = vmatprep.subr.mxu0 0.0
    %174 = vmatpush2.msra.mxu0 0.0
    %175 = vmatprep.mubr.f32.mxu0 0.0
    %176 = vmatmul.mubr.f32.gmra.mxu0 %v109
    %v177 = vpop.f32.mrf.mxu0
    %v178 = vadd.f32 0.0, %v177
    %v179 = vpop.f32.mrf.mxu0
    %180 = vdwg.mxu0
    %v181 = vadd.f32 %v103, %v178
    %v182 = vtanh.pop %v181
    %s183 = scalar_lea.vmem [#allocation3], 2
    %184 = vst.msk [vmem:[%s183] sm:$0x3] %vm100, %v182
    %s185 = scalar_lea.vmem %s0, 4
    %v186 = vld [vmem:[%s185] sm:$0x3]
    %v187 = vld [vmem:[%s1] sm:$0xff]
    %v188 = vld [vmem:[%s1 + $0x8] sm:$0xff]
    %v189 = vld [vmem:[%s1 + $0x10] sm:$0xff]
    %v190 = vld [vmem:[%s1 + $0x18] sm:$0xff]
    %v192 = vsel %vm24, %v182, 0
    %194 = vmatprep.subr.mxu0 0.0
    %195 = vmatpush1.msra.mxu0 0.0
    %196 = vmatprep.subr.mxu0 0.0
    %197 = vmatpush1.msra.mxu0 0.0
    %198 = vmatprep.subr.mxu0 0.0
    %199 = vmatpush1.msra.mxu0 0.0
    %200 = vmatprep.subr.mxu0 0.0
    %201 = vmatpush1.msra.mxu0 0.0
    %202 = vmatprep.subr.mxu0 0.0
    %203 = vmatpush1.msra.mxu0 0.0
    %204 = vmatprep.subr.mxu0 0.0
    %205 = vmatpush1.msra.mxu0 0.0
    %206 = vmatprep.subr.mxu0 0.0
    %207 = vmatpush1.msra.mxu0 0.0
    %208 = vmatprep.subr.mxu0 0.0
    %209 = vmatpush1.msra.mxu0 0.0
    %210 = vmatprep.subr.mxu0 0.0
    %211 = vmatpush1.msra.mxu0 0.0
    %212 = vmatprep.subr.mxu0 0.0
    %213 = vmatpush1.msra.mxu0 0.0
    %214 = vmatprep.subr.mxu0 0.0
    %215 = vmatpush1.msra.mxu0 0.0
    %216 = vmatprep.subr.mxu0 0.0
    %217 = vmatpush1.msra.mxu0 0.0
    %218 = vmatprep.subr.mxu0 0.0
    %219 = vmatpush1.msra.mxu0 %v190
    %220 = vmatprep.subr.mxu0 0.0
    %221 = vmatpush1.msra.mxu0 %v189
    %222 = vmatprep.subr.mxu0 0.0
    %223 = vmatpush1.msra.mxu0 %v188
    %224 = vmatprep.subr.mxu0 0.0
    %225 = vmatpush1.msra.mxu0 %v187
    %226 = vmatprep.subr.mxu0 0.0
    %227 = vmatpush2.msra.mxu0 0.0
    %228 = vmatprep.subr.mxu0 0.0
    %229 = vmatpush2.msra.mxu0 0.0
    %230 = vmatprep.subr.mxu0 0.0
    %231 = vmatpush2.msra.mxu0 0.0
    %232 = vmatprep.subr.mxu0 0.0
    %233 = vmatpush2.msra.mxu0 0.0
    %234 = vmatprep.subr.mxu0 0.0
    %235 = vmatpush2.msra.mxu0 0.0
    %236 = vmatprep.subr.mxu0 0.0
    %237 = vmatpush2.msra.mxu0 0.0
    %238 = vmatprep.subr.mxu0 0.0
    %239 = vmatpush2.msra.mxu0 0.0
    %240 = vmatprep.subr.mxu0 0.0
    %241 = vmatpush2.msra.mxu0 0.0
    %242 = vmatprep.subr.mxu0 0.0
    %243 = vmatpush2.msra.mxu0 0.0
    %244 = vmatprep.subr.mxu0 0.0
    %245 = vmatpush2.msra.mxu0 0.0
    %246 = vmatprep.subr.mxu0 0.0
    %247 = vmatpush2.msra.mxu0 0.0
    %248 = vmatprep.subr.mxu0 0.0
    %249 = vmatpush2.msra.mxu0 0.0
    %250 = vmatprep.subr.mxu0 0.0
    %251 = vmatpush2.msra.mxu0 0.0
    %252 = vmatprep.subr.mxu0 0.0
    %253 = vmatpush2.msra.mxu0 0.0
    %254 = vmatprep.subr.mxu0 0.0
    %255 = vmatpush2.msra.mxu0 0.0
    %256 = vmatprep.subr.mxu0 0.0
    %257 = vmatpush2.msra.mxu0 0.0
    %258 = vmatprep.mubr.f32.mxu0 0.0
    %259 = vmatmul.mubr.f32.gmra.mxu0 %v192
    %v260 = vpop.f32.mrf.mxu0
    %v261 = vadd.f32 0.0, %v260
    %v262 = vpop.f32.mrf.mxu0
    %263 = vdwg.mxu0
    %v264 = vadd.f32 %v186, %v261
    %v265 = vtanh.pop %v264
    %s266 = scalar_lea.vmem [#allocation3], 4
    %267 = vst.msk [vmem:[%s266] sm:$0x3] %vm100, %v265
    %s268 = scalar_lea.vmem %s0, 6
    %v269 = vld [vmem:[%s268] sm:$0x3]
    %v270 = vld [vmem:[%s1] sm:$0xff]
    %v271 = vld [vmem:[%s1 + $0x8] sm:$0xff]
    %v272 = vld [vmem:[%s1 + $0x10] sm:$0xff]
    %v273 = vld [vmem:[%s1 + $0x18] sm:$0xff]
    %v275 = vsel %vm24, %v265, 0
    %277 = vmatprep.subr.mxu0 0.0
    %278 = vmatpush1.msra.mxu0 0.0
    %279 = vmatprep.subr.mxu0 0.0
    %280 = vmatpush1.msra.mxu0 0.0
    %281 = vmatprep.subr.mxu0 0.0
    %282 = vmatpush1.msra.mxu0 0.0
    %283 = vmatprep.subr.mxu0 0.0
    %284 = vmatpush1.msra.mxu0 0.0
    %285 = vmatprep.subr.mxu0 0.0
    %286 = vmatpush1.msra.mxu0 0.0
    %287 = vmatprep.subr.mxu0 0.0
    %288 = vmatpush1.msra.mxu0 0.0
    %289 = vmatprep.subr.mxu0 0.0
    %290 = vmatpush1.msra.mxu0 0.0
    %291 = vmatprep.subr.mxu0 0.0
    %292 = vmatpush1.msra.mxu0 0.0
    %293 = vmatprep.subr.mxu0 0.0
    %294 = vmatpush1.msra.mxu0 0.0
    %295 = vmatprep.subr.mxu0 0.0
    %296 = vmatpush1.msra.mxu0 0.0
    %297 = vmatprep.subr.mxu0 0.0
    %298 = vmatpush1.msra.mxu0 0.0
    %299 = vmatprep.subr.mxu0 0.0
    %300 = vmatpush1.msra.mxu0 0.0
    %301 = vmatprep.subr.mxu0 0.0
    %302 = vmatpush1.msra.mxu0 %v273
    %303 = vmatprep.subr.mxu0 0.0
    %304 = vmatpush1.msra.mxu0 %v272
    %305 = vmatprep.subr.mxu0 0.0
    %306 = vmatpush1.msra.mxu0 %v271
    %307 = vmatprep.subr.mxu0 0.0
    %308 = vmatpush1.msra.mxu0 %v270
    %309 = vmatprep.subr.mxu0 0.0
    %310 = vmatpush2.msra.mxu0 0.0
    %311 = vmatprep.subr.mxu0 0.0
    %312 = vmatpush2.msra.mxu0 0.0
    %313 = vmatprep.subr.mxu0 0.0
    %314 = vmatpush2.msra.mxu0 0.0
    %315 = vmatprep.subr.mxu0 0.0
    %316 = vmatpush2.msra.mxu0 0.0
    %317 = vmatprep.subr.mxu0 0.0
    %318 = vmatpush2.msra.mxu0 0.0
    %319 = vmatprep.subr.mxu0 0.0
    %320 = vmatpush2.msra.mxu0 0.0
    %321 = vmatprep.subr.mxu0 0.0
    %322 = vmatpush2.msra.mxu0 0.0
    %323 = vmatprep.subr.mxu0 0.0
    %324 = vmatpush2.msra.mxu0 0.0
    %325 = vmatprep.subr.mxu0 0.0
    %326 = vmatpush2.msra.mxu0 0.0
    %327 = vmatprep.subr.mxu0 0.0
    %328 = vmatpush2.msra.mxu0 0.0
    %329 = vmatprep.subr.mxu0 0.0
    %330 = vmatpush2.msra.mxu0 0.0
    %331 = vmatprep.subr.mxu0 0.0
    %332 = vmatpush2.msra.mxu0 0.0
    %333 = vmatprep.subr.mxu0 0.0
    %334 = vmatpush2.msra.mxu0 0.0
    %335 = vmatprep.subr.mxu0 0.0
    %336 = vmatpush2.msra.mxu0 0.0
    %337 = vmatprep.subr.mxu0 0.0
    %338 = vmatpush2.msra.mxu0 0.0
    %339 = vmatprep.subr.mxu0 0.0
    %340 = vmatpush2.msra.mxu0 0.0
    %341 = vmatprep.mubr.f32.mxu0 0.0
    %342 = vmatmul.mubr.f32.gmra.mxu0 %v275
    %v343 = vpop.f32.mrf.mxu0
    %v344 = vadd.f32 0.0, %v343
    %v345 = vpop.f32.mrf.mxu0
    %346 = vdwg.mxu0
    %v347 = vadd.f32 %v269, %v344
    %v348 = vtanh.pop %v347
    %s349 = scalar_lea.vmem [#allocation3], 6
    %350 = vst.msk [vmem:[%s349] sm:$0x3] %vm100, %v348
    %s351 = scalar_lea.vmem %s0, 8
    %v352 = vld [vmem:[%s351] sm:$0x3]
    %v353 = vld [vmem:[%s1] sm:$0xff]
    %v354 = vld [vmem:[%s1 + $0x8] sm:$0xff]
    %v355 = vld [vmem:[%s1 + $0x10] sm:$0xff]
    %v356 = vld [vmem:[%s1 + $0x18] sm:$0xff]
    %v358 = vsel %vm24, %v348, 0
    %360 = vmatprep.subr.mxu0 0.0
    %361 = vmatpush1.msra.mxu0 0.0
    %362 = vmatprep.subr.mxu0 0.0
    %363 = vmatpush1.msra.mxu0 0.0
    %364 = vmatprep.subr.mxu0 0.0
    %365 = vmatpush1.msra.mxu0 0.0
    %366 = vmatprep.subr.mxu0 0.0
    %367 = vmatpush1.msra.mxu0 0.0
    %368 = vmatprep.subr.mxu0 0.0
    %369 = vmatpush1.msra.mxu0 0.0
    %370 = vmatprep.subr.mxu0 0.0
    %371 = vmatpush1.msra.mxu0 0.0
    %372 = vmatprep.subr.mxu0 0.0
    %373 = vmatpush1.msra.mxu0 0.0
    %374 = vmatprep.subr.mxu0 0.0
    %375 = vmatpush1.msra.mxu0 0.0
    %376 = vmatprep.subr.mxu0 0.0
    %377 = vmatpush1.msra.mxu0 0.0
    %378 = vmatprep.subr.mxu0 0.0
    %379 = vmatpush1.msra.mxu0 0.0
    %380 = vmatprep.subr.mxu0 0.0
    %381 = vmatpush1.msra.mxu0 0.0
    %382 = vmatprep.subr.mxu0 0.0
    %383 = vmatpush1.msra.mxu0 0.0
    %384 = vmatprep.subr.mxu0 0.0
    %385 = vmatpush1.msra.mxu0 %v356
    %386 = vmatprep.subr.mxu0 0.0
    %387 = vmatpush1.msra.mxu0 %v355
    %388 = vmatprep.subr.mxu0 0.0
    %389 = vmatpush1.msra.mxu0 %v354
    %390 = vmatprep.subr.mxu0 0.0
    %391 = vmatpush1.msra.mxu0 %v353
    %392 = vmatprep.subr.mxu0 0.0
    %393 = vmatpush2.msra.mxu0 0.0
    %394 = vmatprep.subr.mxu0 0.0
    %395 = vmatpush2.msra.mxu0 0.0
    %396 = vmatprep.subr.mxu0 0.0
    %397 = vmatpush2.msra.mxu0 0.0
    %398 = vmatprep.subr.mxu0 0.0
    %399 = vmatpush2.msra.mxu0 0.0
    %400 = vmatprep.subr.mxu0 0.0
    %401 = vmatpush2.msra.mxu0 0.0
    %402 = vmatprep.subr.mxu0 0.0
    %403 = vmatpush2.msra.mxu0 0.0
    %404 = vmatprep.subr.mxu0 0.0
    %405 = vmatpush2.msra.mxu0 0.0
    %406 = vmatprep.subr.mxu0 0.0
    %407 = vmatpush2.msra.mxu0 0.0
    %408 = vmatprep.subr.mxu0 0.0
    %409 = vmatpush2.msra.mxu0 0.0
    %410 = vmatprep.subr.mxu0 0.0
    %411 = vmatpush2.msra.mxu0 0.0
    %412 = vmatprep.subr.mxu0 0.0
    %413 = vmatpush2.msra.mxu0 0.0
    %414 = vmatprep.subr.mxu0 0.0
    %415 = vmatpush2.msra.mxu0 0.0
    %416 = vmatprep.subr.mxu0 0.0
    %417 = vmatpush2.msra.mxu0 0.0
    %418 = vmatprep.subr.mxu0 0.0
    %419 = vmatpush2.msra.mxu0 0.0
    %420 = vmatprep.subr.mxu0 0.0
    %421 = vmatpush2.msra.mxu0 0.0
    %422 = vmatprep.subr.mxu0 0.0
    %423 = vmatpush2.msra.mxu0 0.0
    %424 = vmatprep.mubr.f32.mxu0 0.0
    %425 = vmatmul.mubr.f32.gmra.mxu0 %v358
    %v426 = vpop.f32.mrf.mxu0
    %v427 = vadd.f32 0.0, %v426
    %v428 = vpop.f32.mrf.mxu0
    %429 = vdwg.mxu0
    %v430 = vadd.f32 %v352, %v427
    %v431 = vtanh.pop %v430
    %s432 = scalar_lea.vmem [#allocation3], 8
    %433 = vst.msk [vmem:[%s432] sm:$0x3] %vm100, %v431
    %s434 = scalar_lea.vmem %s0, 10
    %v435 = vld [vmem:[%s434] sm:$0x3]
    %v436 = vld [vmem:[%s1] sm:$0xff]
    %v437 = vld [vmem:[%s1 + $0x8] sm:$0xff]
    %v438 = vld [vmem:[%s1 + $0x10] sm:$0xff]
    %v439 = vld [vmem:[%s1 + $0x18] sm:$0xff]
    %v441 = vsel %vm24, %v431, 0
    %443 = vmatprep.subr.mxu0 0.0
    %444 = vmatpush1.msra.mxu0 0.0
    %445 = vmatprep.subr.mxu0 0.0
    %446 = vmatpush1.msra.mxu0 0.0
    %447 = vmatprep.subr.mxu0 0.0
    %448 = vmatpush1.msra.mxu0 0.0
    %449 = vmatprep.subr.mxu0 0.0
    %450 = vmatpush1.msra.mxu0 0.0
    %451 = vmatprep.subr.mxu0 0.0
    %452 = vmatpush1.msra.mxu0 0.0
    %453 = vmatprep.subr.mxu0 0.0
    %454 = vmatpush1.msra.mxu0 0.0
    %455 = vmatprep.subr.mxu0 0.0
    %456 = vmatpush1.msra.mxu0 0.0
    %457 = vmatprep.subr.mxu0 0.0
    %458 = vmatpush1.msra.mxu0 0.0
    %459 = vmatprep.subr.mxu0 0.0
    %460 = vmatpush1.msra.mxu0 0.0
    %461 = vmatprep.subr.mxu0 0.0
    %462 = vmatpush1.msra.mxu0 0.0
    %463 = vmatprep.subr.mxu0 0.0
    %464 = vmatpush1.msra.mxu0 0.0
    %465 = vmatprep.subr.mxu0 0.0
    %466 = vmatpush1.msra.mxu0 0.0
    %467 = vmatprep.subr.mxu0 0.0
    %468 = vmatpush1.msra.mxu0 %v439
    %469 = vmatprep.subr.mxu0 0.0
    %470 = vmatpush1.msra.mxu0 %v438
    %471 = vmatprep.subr.mxu0 0.0
    %472 = vmatpush1.msra.mxu0 %v437
    %473 = vmatprep.subr.mxu0 0.0
    %474 = vmatpush1.msra.mxu0 %v436
    %475 = vmatprep.subr.mxu0 0.0
    %476 = vmatpush2.msra.mxu0 0.0
    %477 = vmatprep.subr.mxu0 0.0
    %478 = vmatpush2.msra.mxu0 0.0
    %479 = vmatprep.subr.mxu0 0.0
    %480 = vmatpush2.msra.mxu0 0.0
    %481 = vmatprep.subr.mxu0 0.0
    %482 = vmatpush2.msra.mxu0 0.0
    %483 = vmatprep.subr.mxu0 0.0
    %484 = vmatpush2.msra.mxu0 0.0
    %485 = vmatprep.subr.mxu0 0.0
    %486 = vmatpush2.msra.mxu0 0.0
    %487 = vmatprep.subr.mxu0 0.0
    %488 = vmatpush2.msra.mxu0 0.0
    %489 = vmatprep.subr.mxu0 0.0
    %490 = vmatpush2.msra.mxu0 0.0
    %491 = vmatprep.subr.mxu0 0.0
    %492 = vmatpush2.msra.mxu0 0.0
    %493 = vmatprep.subr.mxu0 0.0
    %494 = vmatpush2.msra.mxu0 0.0
    %495 = vmatprep.subr.mxu0 0.0
    %496 = vmatpush2.msra.mxu0 0.0
    %497 = vmatprep.subr.mxu0 0.0
    %498 = vmatpush2.msra.mxu0 0.0
    %499 = vmatprep.subr.mxu0 0.0
    %500 = vmatpush2.msra.mxu0 0.0
    %501 = vmatprep.subr.mxu0 0.0
    %502 = vmatpush2.msra.mxu0 0.0
    %503 = vmatprep.subr.mxu0 0.0
    %504 = vmatpush2.msra.mxu0 0.0
    %505 = vmatprep.subr.mxu0 0.0
    %506 = vmatpush2.msra.mxu0 0.0
    %507 = vmatprep.mubr.f32.mxu0 0.0
    %508 = vmatmul.mubr.f32.gmra.mxu0 %v441
    %v509 = vpop.f32.mrf.mxu0
    %v510 = vadd.f32 0.0, %v509
    %v511 = vpop.f32.mrf.mxu0
    %512 = vdwg.mxu0
    %v513 = vadd.f32 %v435, %v510
    %v514 = vtanh.pop %v513
    %s515 = scalar_lea.vmem [#allocation3], 10
    %516 = vst.msk [vmem:[%s515] sm:$0x3] %vm100, %v514
    %s517 = scalar_lea.vmem %s0, 12
    %v518 = vld [vmem:[%s517] sm:$0x3]
    %v519 = vld [vmem:[%s1] sm:$0xff]
    %v520 = vld [vmem:[%s1 + $0x8] sm:$0xff]
    %v521 = vld [vmem:[%s1 + $0x10] sm:$0xff]
    %v522 = vld [vmem:[%s1 + $0x18] sm:$0xff]
    %v524 = vsel %vm24, %v514, 0
    %526 = vmatprep.subr.mxu0 0.0
    %527 = vmatpush1.msra.mxu0 0.0
    %528 = vmatprep.subr.mxu0 0.0
    %529 = vmatpush1.msra.mxu0 0.0
    %530 = vmatprep.subr.mxu0 0.0
    %531 = vmatpush1.msra.mxu0 0.0
    %532 = vmatprep.subr.mxu0 0.0
    %533 = vmatpush1.msra.mxu0 0.0
    %534 = vmatprep.subr.mxu0 0.0
    %535 = vmatpush1.msra.mxu0 0.0
    %536 = vmatprep.subr.mxu0 0.0
    %537 = vmatpush1.msra.mxu0 0.0
    %538 = vmatprep.subr.mxu0 0.0
    %539 = vmatpush1.msra.mxu0 0.0
    %540 = vmatprep.subr.mxu0 0.0
    %541 = vmatpush1.msra.mxu0 0.0
    %542 = vmatprep.subr.mxu0 0.0
    %543 = vmatpush1.msra.mxu0 0.0
    %544 = vmatprep.subr.mxu0 0.0
    %545 = vmatpush1.msra.mxu0 0.0
    %546 = vmatprep.subr.mxu0 0.0
    %547 = vmatpush1.msra.mxu0 0.0
    %548 = vmatprep.subr.mxu0 0.0
    %549 = vmatpush1.msra.mxu0 0.0
    %550 = vmatprep.subr.mxu0 0.0
    %551 = vmatpush1.msra.mxu0 %v522
    %552 = vmatprep.subr.mxu0 0.0
    %553 = vmatpush1.msra.mxu0 %v521
    %554 = vmatprep.subr.mxu0 0.0
    %555 = vmatpush1.msra.mxu0 %v520
    %556 = vmatprep.subr.mxu0 0.0
    %557 = vmatpush1.msra.mxu0 %v519
    %558 = vmatprep.subr.mxu0 0.0
    %559 = vmatpush2.msra.mxu0 0.0
    %560 = vmatprep.subr.mxu0 0.0
    %561 = vmatpush2.msra.mxu0 0.0
    %562 = vmatprep.subr.mxu0 0.0
    %563 = vmatpush2.msra.mxu0 0.0
    %564 = vmatprep.subr.mxu0 0.0
    %565 = vmatpush2.msra.mxu0 0.0
    %566 = vmatprep.subr.mxu0 0.0
    %567 = vmatpush2.msra.mxu0 0.0
    %568 = vmatprep.subr.mxu0 0.0
    %569 = vmatpush2.msra.mxu0 0.0
    %570 = vmatprep.subr.mxu0 0.0
    %571 = vmatpush2.msra.mxu0 0.0
    %572 = vmatprep.subr.mxu0 0.0
    %573 = vmatpush2.msra.mxu0 0.0
    %574 = vmatprep.subr.mxu0 0.0
    %575 = vmatpush2.msra.mxu0 0.0
    %576 = vmatprep.subr.mxu0 0.0
    %577 = vmatpush2.msra.mxu0 0.0
    %578 = vmatprep.subr.mxu0 0.0
    %579 = vmatpush2.msra.mxu0 0.0
    %580 = vmatprep.subr.mxu0 0.0
    %581 = vmatpush2.msra.mxu0 0.0
    %582 = vmatprep.subr.mxu0 0.0
    %583 = vmatpush2.msra.mxu0 0.0
    %584 = vmatprep.subr.mxu0 0.0
    %585 = vmatpush2.msra.mxu0 0.0
    %586 = vmatprep.subr.mxu0 0.0
    %587 = vmatpush2.msra.mxu0 0.0
    %588 = vmatprep.subr.mxu0 0.0
    %589 = vmatpush2.msra.mxu0 0.0
    %590 = vmatprep.mubr.f32.mxu0 0.0
    %591 = vmatmul.mubr.f32.gmra.mxu0 %v524
    %v592 = vpop.f32.mrf.mxu0
    %v593 = vadd.f32 0.0, %v592
    %v594 = vpop.f32.mrf.mxu0
    %595 = vdwg.mxu0
    %v596 = vadd.f32 %v518, %v593
    %v597 = vtanh.pop %v596
    %s598 = scalar_lea.vmem [#allocation3], 12
    %599 = vst.msk [vmem:[%s598] sm:$0x3] %vm100, %v597
    %s600 = scalar_lea.vmem %s0, 14
    %v601 = vld [vmem:[%s600] sm:$0x3]
    %v602 = vld [vmem:[%s1] sm:$0xff]
    %v603 = vld [vmem:[%s1 + $0x8] sm:$0xff]
    %v604 = vld [vmem:[%s1 + $0x10] sm:$0xff]
    %v605 = vld [vmem:[%s1 + $0x18] sm:$0xff]
    %v607 = vsel %vm24, %v597, 0
    %609 = vmatprep.subr.mxu0 0.0
    %610 = vmatpush1.msra.mxu0 0.0
    %611 = vmatprep.subr.mxu0 0.0
    %612 = vmatpush1.msra.mxu0 0.0
    %613 = vmatprep.subr.mxu0 0.0
    %614 = vmatpush1.msra.mxu0 0.0
    %615 = vmatprep.subr.mxu0 0.0
    %616 = vmatpush1.msra.mxu0 0.0
    %617 = vmatprep.subr.mxu0 0.0
    %618 = vmatpush1.msra.mxu0 0.0
    %619 = vmatprep.subr.mxu0 0.0
    %620 = vmatpush1.msra.mxu0 0.0
    %621 = vmatprep.subr.mxu0 0.0
    %622 = vmatpush1.msra.mxu0 0.0
    %623 = vmatprep.subr.mxu0 0.0
    %624 = vmatpush1.msra.mxu0 0.0
    %625 = vmatprep.subr.mxu0 0.0
    %626 = vmatpush1.msra.mxu0 0.0
    %627 = vmatprep.subr.mxu0 0.0
    %628 = vmatpush1.msra.mxu0 0.0
    %629 = vmatprep.subr.mxu0 0.0
    %630 = vmatpush1.msra.mxu0 0.0
    %631 = vmatprep.subr.mxu0 0.0
    %632 = vmatpush1.msra.mxu0 0.0
    %633 = vmatprep.subr.mxu0 0.0
    %634 = vmatpush1.msra.mxu0 %v605
    %635 = vmatprep.subr.mxu0 0.0
    %636 = vmatpush1.msra.mxu0 %v604
    %637 = vmatprep.subr.mxu0 0.0
    %638 = vmatpush1.msra.mxu0 %v603
    %639 = vmatprep.subr.mxu0 0.0
    %640 = vmatpush1.msra.mxu0 %v602
    %641 = vmatprep.subr.mxu0 0.0
    %642 = vmatpush2.msra.mxu0 0.0
    %643 = vmatprep.subr.mxu0 0.0
    %644 = vmatpush2.msra.mxu0 0.0
    %645 = vmatprep.subr.mxu0 0.0
    %646 = vmatpush2.msra.mxu0 0.0
    %647 = vmatprep.subr.mxu0 0.0
    %648 = vmatpush2.msra.mxu0 0.0
    %649 = vmatprep.subr.mxu0 0.0
    %650 = vmatpush2.msra.mxu0 0.0
    %651 = vmatprep.subr.mxu0 0.0
    %652 = vmatpush2.msra.mxu0 0.0
    %653 = vmatprep.subr.mxu0 0.0
    %654 = vmatpush2.msra.mxu0 0.0
    %655 = vmatprep.subr.mxu0 0.0
    %656 = vmatpush2.msra.mxu0 0.0
    %657 = vmatprep.subr.mxu0 0.0
    %658 = vmatpush2.msra.mxu0 0.0
    %659 = vmatprep.subr.mxu0 0.0
    %660 = vmatpush2.msra.mxu0 0.0
    %661 = vmatprep.subr.mxu0 0.0
    %662 = vmatpush2.msra.mxu0 0.0
    %663 = vmatprep.subr.mxu0 0.0
    %664 = vmatpush2.msra.mxu0 0.0
    %665 = vmatprep.subr.mxu0 0.0
    %666 = vmatpush2.msra.mxu0 0.0
    %667 = vmatprep.subr.mxu0 0.0
    %668 = vmatpush2.msra.mxu0 0.0
    %669 = vmatprep.subr.mxu0 0.0
    %670 = vmatpush2.msra.mxu0 0.0
    %671 = vmatprep.subr.mxu0 0.0
    %672 = vmatpush2.msra.mxu0 0.0
    %673 = vmatprep.mubr.f32.mxu0 0.0
    %674 = vmatmul.mubr.f32.gmra.mxu0 %v607
    %v675 = vpop.f32.mrf.mxu0
    %v676 = vadd.f32 0.0, %v675
    %v677 = vpop.f32.mrf.mxu0
    %678 = vdwg.mxu0
    %v679 = vadd.f32 %v601, %v676
    %v680 = vtanh.pop %v679
    %s681 = scalar_lea.vmem [#allocation3], 14
    %682 = vst.msk [vmem:[%s681] sm:$0x3] %vm100, %v680
    %683 = vst.msk [vmem:[#allocation2] sm:$0x3] %vm100, %v680
    // Predicated region
    $region14: #{random_rnn_forward.3} parent=1 // pred_check
      _
    $region15: #{random_rnn_forward.3} parent=1 // pred_check_branch
      %685 = sbr.rel (0) target = $region17
    $region16: #{random_rnn_forward.3} parent=1 // pred_region
      %s687 = ssub.s32 256, 256
      %688 = vsyncadd [#allocation4], %s687
      %s689 = sshll.u32 [#allocation3], 4
      %s690 = int_to_ptr.vmem [resolvable:$true] %s689
      %695 = dma.vmem_to_hbm [thread:$0]  %s690, 256, %s2, [#allocation4], 32, 32, 2
    $region17: #{random_rnn_forward.3} parent=1 // pred_fallthru
      _
    // Predicated region
    $region18: #{random_rnn_forward.3} parent=1 // pred_check
      _
    $region19: #{random_rnn_forward.3} parent=1 // pred_check_branch
      %697 = sbr.rel (0) target = $region21
    $region20: #{random_rnn_forward.3} parent=1 // pred_region
      %698 = dma.done [#allocation4], 256
    $region21: #{random_rnn_forward.3} parent=1 // pred_fallthru
      _
    %699 = vsyncpa [#allocation4], 1

</llo_original>
